<compile_context>
chip_gen: v6e
topology: v6e:2x2x1
jax: 0.10.0
libtpu: 0.0.40
codegen_flags: <defaults>
</compile_context>

<pallas_src>
import functools

import numpy as np
import jax
import jax.numpy as jnp
from jax import lax
from jax.experimental import pallas as pl
from jax.experimental.pallas import tpu as pltpu


_LANES = 128            # vreg lane width: last block dim is exactly 128 (lane-dense)
_TR_CAP = 512           # rows-of-128 per block -> 256 KiB f32 per operand block
_PALLAS_MIN_ELEMENTS = 1 << 20   # below this, do the add in XLA (fuses into conv1)


def _round_up(x, m):
    return -(-x // m) * m


# ---------------------------------------------------------------------------
# SoftPositionEmbed
# ---------------------------------------------------------------------------

def build_grid(resolution):
    """JAX equivalent of the PyTorch build_grid: returns [1, H, W, 4] float32."""
    ranges = [np.linspace(0.0, 1.0, num=res) for res in resolution]
    grid = np.meshgrid(*ranges, sparse=False, indexing="ij")
    grid = np.stack(grid, axis=-1)
    grid = np.reshape(grid, [resolution[0], resolution[1], -1])
    grid = np.expand_dims(grid, axis=0).astype(np.float32)
    grid = np.concatenate([grid, 1.0 - grid], axis=-1)  # [1, H, W, 4]
    return jnp.asarray(grid)


def position_grid_embedding(grid, weight, bias):
    """grid: [1, H, W, 4]; weight: [C, 4]; bias: [C] -> [H, W, C].

    Computed ONCE in XLA (hoisted out of the Pallas kernel); bias folded in.
    """
    _, H, W, _ = grid.shape
    emb = jnp.dot(grid.reshape(H * W, 4), weight.T,
                  preferred_element_type=jnp.float32) + bias
    return emb.reshape(H, W, -1)


def _add_pos_embed_kernel(x_ref, g_ref, o_ref):
    # x_ref/o_ref: (1, TR, 128) per-batch tile; g_ref: (1, TR, 128) shared
    # positional-embedding tile (same block index across the inner batch axis,
    # so the pipeline re-uses it without re-DMA).
    o_ref[...] = (x_ref[...] + g_ref[...]).astype(o_ref.dtype)


def soft_position_embed(inputs, grid_emb):
    """inputs: [B, H, W, C]; grid_emb: [H, W, C] (precomputed grid @ W^T + b)."""
    B, H, W, C = inputs.shape
    N = H * W * C

    # Lane-dense flattening: (H*W*C,) -> (rows, 128).
    rows = -(-N // _LANES)
    rows_p = _round_up(rows, 8)          # sublane alignment only (<= 7 extra rows)
    n_pad = rows_p * _LANES

    # Row tile: multiple of 8, capped at _TR_CAP (256 KiB f32 per operand block).
    # If B alone cannot feed both v7x TensorCores (B odd / 1), split the row axis.
    tr = min(_TR_CAP, rows_p)
    if B % 2 == 1 and rows_p > 8:
        tr = min(tr, _round_up(-(-rows_p // 2), 8))
    n_row_tiles = -(-rows_p // tr)       # last tile may be ragged (Pallas masks it)

    x_flat = inputs.reshape(B, N)
    g_flat = grid_emb.reshape(1, N)
    if n_pad != N:
        x_flat = jnp.pad(x_flat, ((0, 0), (0, n_pad - N)))
        g_flat = jnp.pad(g_flat, ((0, 0), (0, n_pad - N)))
    x3 = x_flat.reshape(B, rows_p, _LANES)
    g3 = g_flat.reshape(1, rows_p, _LANES)

    out = pl.pallas_call(
        _add_pos_embed_kernel,
        out_shape=jax.ShapeDtypeStruct((B, rows_p, _LANES), inputs.dtype),
        grid_spec=pltpu.PrefetchScalarGridSpec(
            num_scalar_prefetch=0,
            # B innermost: shared g tile keeps the same block index across
            # consecutive steps -> DMA'd once per row tile, not once per batch.
            grid=(n_row_tiles, B),
            in_specs=[
                pl.BlockSpec((1, tr, _LANES), lambda t, b: (b, t, 0)),   # x
                pl.BlockSpec((1, tr, _LANES), lambda t, b: (0, t, 0)),   # g (shared)
            ],
            out_specs=pl.BlockSpec((1, tr, _LANES), lambda t, b: (b, t, 0)),
        ),
        compiler_params=pltpu.CompilerParams(
            # both axes independent -> megacore can shard either (v7x: 2 TCs)
            dimension_semantics=("parallel", "parallel"),
            # actual footprint: 3 operands x 2 buffers x <=256 KiB ~= 1.5 MiB
            vmem_limit_bytes=8 * 1024 * 1024,
        ),
    )(x3, g3)

    return out.reshape(B, n_pad)[:, :N].reshape(B, H, W, C)


# ---------------------------------------------------------------------------
# ConvTranspose2d stack (XLA)
# ---------------------------------------------------------------------------

def _conv_transpose_nhwc(x, w, b, stride, padding, output_padding):
    """PyTorch ConvTranspose2d, NHWC activations.

    w: [c_in, c_out, kh, kw]  (PyTorch ConvTranspose2d weight layout)
    Implemented as: dilate input by `stride`, pad by (k-1-p, k-1-p+op),
    cross-correlate with the spatially flipped kernel.
    """
    kh, kw = int(w.shape[2]), int(w.shape[3])
    w_hwio = jnp.transpose(w[:, :, ::-1, ::-1], (2, 3, 0, 1))  # [kh,kw,ci,co]
    pad_h = (kh - 1 - padding, kh - 1 - padding + output_padding)
    pad_w = (kw - 1 - padding, kw - 1 - padding + output_padding)
    out = lax.conv_general_dilated(
        x, w_hwio,
        window_strides=(1, 1),
        padding=(pad_h, pad_w),
        lhs_dilation=(stride, stride),
        rhs_dilation=(1, 1),
        dimension_numbers=("NHWC", "HWIO", "NHWC"),
    )
    return out + b


def _conv_transpose_ref_np(x, w, b, stride, padding, output_padding):
    """Independent numpy scatter reference of PyTorch ConvTranspose2d (NHWC)."""
    x = np.asarray(x, np.float64); w = np.asarray(w, np.float64)
    b = np.asarray(b, np.float64)
    B, H, W_, _ = x.shape
    _, Co, kh, kw = w.shape
    Ho = (H - 1) * stride - 2 * padding + kh + output_padding
    Wo = (W_ - 1) * stride - 2 * padding + kw + output_padding
    full = np.zeros((B, (H - 1) * stride + kh + output_padding,
                     (W_ - 1) * stride + kw + output_padding, Co), np.float64)
    for h in range(H):
        for ww in range(W_):
            contrib = np.einsum("bi,iokl->bklo", x[:, h, ww, :], w)
            full[:, h * stride:h * stride + kh,
                 ww * stride:ww * stride + kw, :] += contrib
    return full[:, padding:padding + Ho, padding:padding + Wo, :] + b


_CONV_CFG = (  # (name, stride, padding, output_padding); conv1..conv5 followed by ReLU
    ("conv1", 2, 2, 1),
    ("conv2", 2, 2, 1),
    ("conv3", 2, 2, 1),
    ("conv4", 2, 2, 1),
    ("conv5", 1, 2, 0),
)


@functools.partial(jax.jit, static_argnames=("resolution", "use_pallas"))
def decoder_forward(x, params, *, resolution, use_pallas=None):
    """x: [B, 10, 15, hid] NHWC -> [B, resolution[0], resolution[1], 2] NHWC."""
    g_emb = position_grid_embedding(params["pos_grid"], params["pos_w"],
                                    params["pos_b"])
    if use_pallas is None:
        # Small inputs: the XLA add fuses into conv1 (lhs-dilated conv) for
        # free; the Pallas custom call would only add launch overhead and an
        # extra HBM round-trip of x.
        use_pallas = x.size >= _PALLAS_MIN_ELEMENTS
    if use_pallas:
        x = soft_position_embed(x, g_emb)
    else:
        x = x + g_emb[None]
    # PyTorch permutes to NCHW for the convs; we stay NHWC (equivalent math,
    # TPU-friendly layout). The final PyTorch permute back to NHWC is a no-op here.
    for name, stride, pad, opad in _CONV_CFG:
        x = _conv_transpose_nhwc(x, params[name + "_w"], params[name + "_b"],
                                 stride, pad, opad)
        x = jax.nn.relu(x)
    x = _conv_transpose_nhwc(x, params["conv6_w"], params["conv6_b"], 1, 1, 0)
    x = x[:, :resolution[0], :resolution[1], :]
    return x


# ---------------------------------------------------------------------------
# Demo / checks
# ---------------------------------------------------------------------------

if __name__ == "__main__":
    B, hid = 2, 64
    init_res = (10, 15)          # Decoder.decoder_initial_size (fixed by the module)
    resolution = (155, 230)      # final crop (conv stack produces 160 x 240)

    key = jax.random.PRNGKey(0)
    keys = jax.random.split(key, 20)

    x = jax.random.normal(keys[0], (B, init_res[0], init_res[1], hid),
                          dtype=jnp.float32)

    def uniform(k, shape, fan_in):
        bound = 1.0 / np.sqrt(fan_in)
        return jax.random.uniform(k, shape, minval=-bound, maxval=bound,
                                  dtype=jnp.float32)

    params = {
        "pos_grid": build_grid(init_res),          # [1, 10, 15, 4]
        "pos_w": uniform(keys[1], (hid, 4), 4.0),  # Linear(4, hid)
        "pos_b": uniform(keys[2], (hid,), 4.0),
    }
    conv_shapes = [  # PyTorch ConvTranspose2d weight layout: [c_in, c_out, k, k]
        ("conv1", hid, hid, 5), ("conv2", hid, hid, 5), ("conv3", hid, hid, 5),
        ("conv4", hid, hid, 5), ("conv5", hid, hid, 5), ("conv6", hid, 2, 3),
    ]
    ki = 3
    for name, ci, co, k in conv_shapes:
        fan = float(ci * k * k)
        params[name + "_w"] = uniform(keys[ki], (ci, co, k, k), fan); ki += 1
        params[name + "_b"] = uniform(keys[ki], (co,), fan); ki += 1

    # 1) SoftPositionEmbed Pallas kernel vs pure-JAX reference (small shape).
    g_emb = position_grid_embedding(params["pos_grid"], params["pos_w"],
                                    params["pos_b"])
    pe = jax.block_until_ready(soft_position_embed(x, g_emb))
    pe_ref = x + g_emb[None]
    np.testing.assert_allclose(np.asarray(pe), np.asarray(pe_ref),
                               rtol=1e-5, atol=1e-5)

    # 2) Large hidden: multiple row tiles with a ragged last tile, no padding.
    xl = jax.random.normal(keys[15], (B, init_res[0], init_res[1], 1024),
                           dtype=jnp.float32)
    gl = jax.random.normal(keys[16], (init_res[0], init_res[1], 1024),
                           dtype=jnp.float32)
    ol = jax.block_until_ready(soft_position_embed(xl, gl))
    np.testing.assert_allclose(np.asarray(ol), np.asarray(xl + gl[None]),
                               rtol=1e-5, atol=1e-5)

    # 3) Odd batch (B=1): row axis is split so both v7x cores get work.
    x1 = jax.random.normal(keys[17], (1, init_res[0], init_res[1], hid),
                           dtype=jnp.float32)
    o1 = jax.block_until_ready(soft_position_embed(x1, g_emb))
    np.testing.assert_allclose(np.asarray(o1), np.asarray(x1 + g_emb[None]),
                               rtol=1e-5, atol=1e-5)

    # 4) Conv-transpose equivalence vs an independent numpy scatter reference
    #    (PyTorch ConvTranspose2d semantics), stride-2 and stride-1 cases.
    xt = jax.random.normal(keys[18], (1, 3, 4, 2), dtype=jnp.float32)
    wt = jax.random.normal(keys[19], (2, 3, 5, 5), dtype=jnp.float32) * 0.1
    bt = jnp.array([0.1, -0.2, 0.3], dtype=jnp.float32)
    for s, p, op in ((2, 2, 1), (1, 2, 0)):
        got = _conv_transpose_nhwc(xt, wt, bt, s, p, op)
        ref = _conv_transpose_ref_np(xt, wt, bt, s, p, op)
        np.testing.assert_allclose(np.asarray(got), ref, rtol=1e-4, atol=1e-4)

    # 5) Full Decoder forward: Pallas pos-embed vs plain-XLA pos-embed pipeline,
    #    plus the auto-gated default path.
    out = jax.block_until_ready(
        decoder_forward(x, params, resolution=resolution, use_pallas=True))
    out_ref = jax.block_until_ready(
        decoder_forward(x, params, resolution=resolution, use_pallas=False))
    out_auto = jax.block_until_ready(
        decoder_forward(x, params, resolution=resolution))
    assert out.shape == (B, resolution[0], resolution[1], 2), out.shape
    np.testing.assert_allclose(np.asarray(out), np.asarray(out_ref),
                               rtol=1e-4, atol=1e-4)
    np.testing.assert_allclose(np.asarray(out_auto), np.asarray(out_ref),
                               rtol=1e-4, atol=1e-4)

    print("KERNEL_OK")
</pallas_src>

<mosaic_0001>
module attributes {stable_mosaic.version = 11 : i64} {
  func.func @_add_pos_embed_kernel(%arg0: i32, %arg1: i32, %arg2: memref<1x80x128xf32, #tpu.memory_space<vmem>>, %arg3: memref<1x80x128xf32, #tpu.memory_space<vmem>>, %arg4: memref<1x80x128xf32, #tpu.memory_space<vmem>>) attributes {dimension_semantics = [#tpu.dimension_semantics<parallel>, #tpu.dimension_semantics<parallel>], iteration_bounds = array<i64: 1, 2>, scalar_prefetch = 0 : i64, scratch_operands = 0 : i64, tpu.core_type = #tpu.core_type<tc>, window_params = [{transform_indices = @transform_0, window_bounds = array<i64: 1, 80, 128>}, {transform_indices = @transform_1, window_bounds = array<i64: 1, 80, 128>}, {transform_indices = @transform_2, window_bounds = array<i64: 1, 80, 128>}]} {
    %c0 = arith.constant 0 : index
    %c0_0 = arith.constant 0 : index
    %c0_1 = arith.constant 0 : index
    %0 = vector.load %arg2[%c0, %c0_0, %c0_1] : memref<1x80x128xf32, #tpu.memory_space<vmem>>, vector<1x80x128xf32>
    %c0_2 = arith.constant 0 : index
    %c0_3 = arith.constant 0 : index
    %c0_4 = arith.constant 0 : index
    %1 = vector.load %arg3[%c0_2, %c0_3, %c0_4] : memref<1x80x128xf32, #tpu.memory_space<vmem>>, vector<1x80x128xf32>
    %2 = arith.addf %0, %1 : vector<1x80x128xf32>
    %c0_5 = arith.constant 0 : index
    %c0_6 = arith.constant 0 : index
    %c0_7 = arith.constant 0 : index
    %3 = vector.load %arg4[%c0_5, %c0_6, %c0_7] : memref<1x80x128xf32, #tpu.memory_space<vmem>>, vector<1x80x128xf32>
    tpu.vector_store %arg4[%c0_5, %c0_6, %c0_7], %2 {strides = array<i32>} : memref<1x80x128xf32, #tpu.memory_space<vmem>>, vector<1x80x128xf32>,
    return
  }
  func.func @transform_0(%arg0: i32, %arg1: i32) -> (i32, i32, i32) {
    %c0_i32 = arith.constant 0 : i32
    %c0_i32_0 = arith.constant 0 : i32
    return %arg1, %arg0, %c0_i32 : i32, i32, i32
  }
  func.func @transform_1(%arg0: i32, %arg1: i32) -> (i32, i32, i32) {
    %c0_i32 = arith.constant 0 : i32
    %c0_i32_0 = arith.constant 0 : i32
    %c0_i32_1 = arith.constant 0 : i32
    return %c0_i32, %arg0, %c0_i32_0 : i32, i32, i32
  }
  func.func @transform_2(%arg0: i32, %arg1: i32) -> (i32, i32, i32) {
    %c0_i32 = arith.constant 0 : i32
    %c0_i32_0 = arith.constant 0 : i32
    return %arg1, %arg0, %c0_i32 : i32, i32, i32
  }
}

</mosaic_0001>

<llo_original>
// kernel: tpu_custom_call.1
$region0: #{tpu_custom_call.1}
  #allocation0 [shape = 'u32[]', space=smem, size = 0x4, offset = 0x4, fixed_abs, tag = 'smem constant byte address 0x4 - core index']
  #allocation1 [shape = 'u32[144,128]{1,0:T(1,128)}', space=vmem, size = 0x12000, scoped, tag = 'internal scratch']
  %s0 = inlined_call_operand.hbm [shape: f32[2,80,128], index: 0, kind: input, shape index: {}]
  %s1 = inlined_call_operand.hbm [shape: f32[1,80,128], index: 1, kind: input, shape index: {}]
  %s2 = inlined_call_operand.hbm [shape: f32[2,80,128], index: 2, kind: output, shape index: {}]
  %s3 = sld [smem:[#allocation0]]
  $region49: #{tpu_custom_call.1} parent=0
    _
  %s5 = ssub.s32 1, %s3
  %s6 = scalar_select 0, %s5, %s3
  $region1: #{tpu_custom_call.1} parent=0
    #allocation2 [shape = 'u8[81920]{0}', space=vmem, size = 0x14000, scoped, tag = 'input window, operand 0']
    #allocation3 [shape = 's32[2]{0}', space=sflag, size = 0x8, scoped, tag = 'scoped memory for tpu_custom_call.1']
    #allocation4 [shape = 's32[2]{0}', space=sflag, size = 0x8, scoped, tag = 'scoped memory for tpu_custom_call.1']
    #allocation5 [shape = 'u8[40960]{0}', space=vmem, size = 0xa000, scoped, tag = 'input window, operand 1, single buffered']
    #allocation6 [shape = 's32[1]{0}', space=sflag, size = 0x4, scoped, tag = 'scoped memory for tpu_custom_call.1']
    #allocation7 [shape = 'u8[81920]{0}', space=vmem, size = 0x14000, scoped, tag = 'output window, operand 0']
    %7 = vsyncpa [#allocation3], 0
    %s8 = scalar_lea.sflag [#allocation3], 1
    %9 = vsyncpa %s8, 0
    %10 = vsyncpa [#allocation6], 0
    %11 = vsyncpa [#allocation4], 0
    %s12 = scalar_lea.sflag [#allocation4], 1
    %13 = vsyncpa %s12, 0
    loop: start=0, step=1, limit=4
    $region2: #{tpu_custom_call.1} parent=1 // loop_pre_header
      _
    $region3: #{tpu_custom_call.1} parent=1 // loop_header
      %s15 = sphi 0, %s19
      %p16 = scmp.ge.s32.totalorder %s15, 4
      %s22 = sphi 0, %s34
      %s23 = sphi 0, %s30
      %s24 = sphi 0, %s22
      %s25 = sphi 0, %s23
      %s26 = sphi 0, %s24
      %s27 = sphi 0, %s25
      %s39 = sphi 0, %s41
      %s42 = sphi 0, %s39
      %s43 = sphi 0, %s42
      %s59 = sphi 0, %s43
      %s65 = sphi 0, %s67
      %s68 = sphi 0, %s65
      %s69 = sphi 0, %s68
      %s85 = sphi 0, %s69
      %s93 = sphi 0, %s95
      %s96 = sphi 0, %s93
      %s97 = sphi 0, %s96
      %s113 = sphi 0, %s97
    $region4: #{tpu_custom_call.1} parent=1 // loop_header_branch
      %18 = sbr.rel (%p16) target = $region8
    $region5: #{tpu_custom_call.1} parent=1 // loop_body
      %s20 = ssub.s32 %s15, 1
      %s21 = ssub.s32 %s15, 2
      %s28 = sadd.s32 1, %s23
      %p29 = scmp.ge.s32.totalorder %s28, 2
      %s30 = scalar_select %p29, 0, %s28
      %s31 = sadd.s32 1, %s22
      %s32 = scalar_select %p29, %s31, %s22
      %p33 = scmp.ge.s32.totalorder %s32, 1
      %s34 = scalar_select %p33, 0, %s32
      %s35 = ssub.s32 %s23, %s30
      %s36 = ssub.s32 %s22, %s34
      %s37 = sor.u32 %s35, %s36
      %p38 = scmp.eq.s32.totalorder %s37, 0
      %s40 = sadd.s32 %s39, 1
      %s41 = scalar_select %p38, %s39, %s40
      %p44 = pneg %p38
      %p45 = scmp.eq.s32.totalorder %s15, 1
      %p46 = por %p44, %p45
      %p47 = scmp.ne.s32.totalorder %s39, %s42
      %p48 = scmp.eq.s32.totalorder %s15, 0
      %p49 = por %p47, %p48
      %p50 = scmp.ne.s32.totalorder %s39, %s42
      %p51 = scmp.eq.s32.totalorder %s20, 1
      %p52 = por %p50, %p51
      %p53 = scmp.ne.s32.totalorder %s42, %s43
      %p54 = scmp.eq.s32.totalorder %s20, 0
      %p55 = por %p53, %p54
      %p56 = scmp.ne.s32.totalorder %s42, %s43
      %p57 = scmp.eq.s32.totalorder %s21, 1
      %p58 = por %p56, %p57
      %p60 = scmp.ne.s32.totalorder %s43, %s59
      %p61 = scmp.eq.s32.totalorder %s21, 0
      %p62 = por %p60, %p61
      %s63 = ssub.s32 %s22, %s34
      %p64 = scmp.eq.s32.totalorder %s63, 0
      %s66 = sadd.s32 %s65, 1
      %s67 = scalar_select %p64, %s65, %s66
      %p70 = pneg %p64
      %p71 = scmp.eq.s32.totalorder %s15, 1
      %p72 = por %p70, %p71
      %p73 = scmp.ne.s32.totalorder %s65, %s68
      %p74 = scmp.eq.s32.totalorder %s15, 0
      %p75 = por %p73, %p74
      %p76 = scmp.ne.s32.totalorder %s65, %s68
      %p77 = scmp.eq.s32.totalorder %s20, 1
      %p78 = por %p76, %p77
      %p79 = scmp.ne.s32.totalorder %s68, %s69
      %p80 = scmp.eq.s32.totalorder %s20, 0
      %p81 = por %p79, %p80
      %p82 = scmp.ne.s32.totalorder %s68, %s69
      %p83 = scmp.eq.s32.totalorder %s21, 1
      %p84 = por %p82, %p83
      %p86 = scmp.ne.s32.totalorder %s69, %s85
      %p87 = scmp.eq.s32.totalorder %s21, 0
      %p88 = por %p86, %p87
      %s89 = ssub.s32 %s23, %s30
      %s90 = ssub.s32 %s22, %s34
      %s91 = sor.u32 %s89, %s90
      %p92 = scmp.eq.s32.totalorder %s91, 0
      %s94 = sadd.s32 %s93, 1
      %s95 = scalar_select %p92, %s93, %s94
      %p98 = pneg %p92
      %p99 = scmp.eq.s32.totalorder %s15, 1
      %p100 = por %p98, %p99
      %p101 = scmp.ne.s32.totalorder %s93, %s96
      %p102 = scmp.eq.s32.totalorder %s15, 0
      %p103 = por %p101, %p102
      %p104 = scmp.ne.s32.totalorder %s93, %s96
      %p105 = scmp.eq.s32.totalorder %s20, 1
      %p106 = por %p104, %p105
      %p107 = scmp.ne.s32.totalorder %s96, %s97
      %p108 = scmp.eq.s32.totalorder %s20, 0
      %p109 = por %p107, %p108
      %p110 = scmp.ne.s32.totalorder %s96, %s97
      %p111 = scmp.eq.s32.totalorder %s21, 1
      %p112 = por %p110, %p111
      %p114 = scmp.ne.s32.totalorder %s97, %s113
      %p115 = scmp.eq.s32.totalorder %s21, 0
      %p116 = por %p114, %p115
      %p117 = scmp.le.s32.totalorder 1, %s15
      %p118 = scmp.lt.s32.totalorder %s15, 3
      %p119 = pnand %p117, %p118
      %p120 = pneg %p119
      // Predicated region
      $region9: #{tpu_custom_call.1} parent=5 // pred_check
        _
      $region10: #{tpu_custom_call.1} parent=5 // pred_check_branch
        %122 = sbr.rel (%p119) target = $region12
      $region11: #{tpu_custom_call.1} parent=5 // pred_region
        %s123 = ssub.s32 %s15, 1
        // Predicated region
        $region13: #{tpu_custom_call.1} parent=11 // pred_check
          %p124 = pneg %p81
        $region14: #{tpu_custom_call.1} parent=11 // pred_check_branch
          %126 = sbr.rel (%p124) target = $region16
        $region15: #{tpu_custom_call.1} parent=11 // pred_region
          %s127 = smul.u32 10, %s24
          %s129 = ssub.s32 1280, 1280
          %130 = vsyncadd [#allocation6], %s129
          %s131 = smul.addr %s127, 128
          %s132 = scalar_lea.hbm %s1, %s131
          %s133 = sshll.u32 [#allocation5], 4
          %s134 = int_to_ptr.vmem [resolvable:$true] %s133
          %139 = dma.hbm_to_vmem [thread:$0]  %s132, 1280, %s134, [#allocation6], 128, 128, 8
        $region16: #{tpu_custom_call.1} parent=11 // pred_fallthru
          _
      $region12: #{tpu_custom_call.1} parent=5 // pred_fallthru
        _
      %p140 = scmp.lt.s32.totalorder %s15, 2
      // Predicated region
      $region17: #{tpu_custom_call.1} parent=5 // pred_check
        %p141 = pneg %p140
      $region18: #{tpu_custom_call.1} parent=5 // pred_check_branch
        %143 = sbr.rel (%p141) target = $region20
      $region19: #{tpu_custom_call.1} parent=5 // pred_region
        // Predicated region
        $region21: #{tpu_custom_call.1} parent=19 // pred_check
          %p144 = pneg %p49
        $region22: #{tpu_custom_call.1} parent=19 // pred_check_branch
          %146 = sbr.rel (%p144) target = $region24
        $region23: #{tpu_custom_call.1} parent=19 // pred_region
          %s147 = sand.u32 %s39, 1
          %s148 = scalar_lea.sflag [#allocation3], %s147
          %s149 = sand.u32 %s39, 1
          %s150 = smul.addr %s149, 80
          %s151 = scalar_lea.vmem [#allocation2], %s150
          %s152 = smul.u32 10, %s22
          %s154 = ssub.s32 1280, 1280
          %155 = vsyncadd %s148, %s154
          %s156 = smul.addr %s23, 10
          %s157 = sadd.s32 %s152, %s156
          %s158 = smul.addr %s157, 128
          %s159 = scalar_lea.hbm %s0, %s158
          %s160 = sshll.u32 %s151, 4
          %s161 = int_to_ptr.vmem [resolvable:$true] %s160
          %166 = dma.hbm_to_vmem [thread:$0]  %s159, 1280, %s161, %s148, 128, 128, 8
        $region24: #{tpu_custom_call.1} parent=19 // pred_fallthru
          _
      $region20: #{tpu_custom_call.1} parent=5 // pred_fallthru
        _
      %p167 = scmp.le.s32.totalorder 1, %s15
      %p168 = scmp.lt.s32.totalorder %s15, 3
      %p169 = pnand %p167, %p168
      %p170 = pneg %p169
      // Predicated region
      $region25: #{tpu_custom_call.1} parent=5 // pred_check
        _
      $region26: #{tpu_custom_call.1} parent=5 // pred_check_branch
        %172 = sbr.rel (%p169) target = $region28
      $region27: #{tpu_custom_call.1} parent=5 // pred_region
        %s173 = ssub.s32 %s15, 1
        %s174 = sand.u32 %s42, 1
        %s175 = scalar_lea.sflag [#allocation3], %s174
        %s176 = sand.u32 %s42, 1
        %s177 = smul.addr %s176, 80
        %s178 = scalar_lea.vmem [#allocation2], %s177
        // Predicated region
        $region29: #{tpu_custom_call.1} parent=27 // pred_check
          %p179 = pneg %p55
        $region30: #{tpu_custom_call.1} parent=27 // pred_check_branch
          %181 = sbr.rel (%p179) target = $region32
        $region31: #{tpu_custom_call.1} parent=27 // pred_region
          %182 = dma.done %s175, 1280
        $region32: #{tpu_custom_call.1} parent=27 // pred_fallthru
          _
        // Predicated region
        $region33: #{tpu_custom_call.1} parent=27 // pred_check
          %p183 = pneg %p81
        $region34: #{tpu_custom_call.1} parent=27 // pred_check_branch
          %185 = sbr.rel (%p183) target = $region36
        $region35: #{tpu_custom_call.1} parent=27 // pred_region
          %186 = dma.done [#allocation6], 1280
        $region36: #{tpu_custom_call.1} parent=27 // pred_fallthru
          _
        %s187 = sand.u32 %s42, 1
        %s188 = scalar_lea.sflag [#allocation3], %s187
        %s189 = sand.u32 %s42, 1
        %s190 = smul.addr %s189, 80
        %s191 = scalar_lea.vmem [#allocation2], %s190
        %p192 = pneg %p55
        %p193 = pneg %p52
        %p194 = pneg %p81
        %p195 = pneg %p78
        %p196 = pneg %p109
        %p197 = pneg %p106
        %s198 = sand.u32 %s96, 1
        %s199 = scalar_lea.sflag [#allocation4], %s198
        %s200 = sand.u32 %s96, 1
        %s201 = smul.addr %s200, 80
        %s202 = scalar_lea.vmem [#allocation7], %s201
        %s203 = smul.u32 10, %s24
        %s204 = smul.u32 10, %s24
        %s205 = smul.u32 10, %s24
        %v206 = vld [vmem:[%s178] sm:$0xff]
        %v207 = vld [vmem:[%s178 + $0x8] sm:$0xff]
        %v208 = vld [vmem:[%s178 + $0x10] sm:$0xff]
        %v209 = vld [vmem:[%s178 + $0x18] sm:$0xff]
        %v210 = vld [vmem:[%s178 + $0x20] sm:$0xff]
        %v211 = vld [vmem:[%s178 + $0x28] sm:$0xff]
        %v212 = vld [vmem:[%s178 + $0x30] sm:$0xff]
        %v213 = vld [vmem:[%s178 + $0x38] sm:$0xff]
        %v214 = vld [vmem:[%s178 + $0x40] sm:$0xff]
        %v215 = vld [vmem:[%s178 + $0x48] sm:$0xff]
        %v216 = vld [vmem:[#allocation5] sm:$0xff]
        %v217 = vld [vmem:[#allocation5 + $0x8] sm:$0xff]
        %v218 = vld [vmem:[#allocation5 + $0x10] sm:$0xff]
        %v219 = vld [vmem:[#allocation5 + $0x18] sm:$0xff]
        %v220 = vld [vmem:[#allocation5 + $0x20] sm:$0xff]
        %v221 = vld [vmem:[#allocation5 + $0x28] sm:$0xff]
        %v222 = vld [vmem:[#allocation5 + $0x30] sm:$0xff]
        %v223 = vld [vmem:[#allocation5 + $0x38] sm:$0xff]
        %v224 = vld [vmem:[#allocation5 + $0x40] sm:$0xff]
        %v225 = vld [vmem:[#allocation5 + $0x48] sm:$0xff]
        %v226 = vadd.f32 %v206, %v216
        %v227 = vadd.f32 %v207, %v217
        %v228 = vadd.f32 %v208, %v218
        %v229 = vadd.f32 %v209, %v219
        %v230 = vadd.f32 %v210, %v220
        %v231 = vadd.f32 %v211, %v221
        %v232 = vadd.f32 %v212, %v222
        %v233 = vadd.f32 %v213, %v223
        %v234 = vadd.f32 %v214, %v224
        %v235 = vadd.f32 %v215, %v225
        %236 = vst [vmem:[%s202] sm:$0xff] %v226
        %237 = vst [vmem:[%s202 + $0x8] sm:$0xff] %v227
        %238 = vst [vmem:[%s202 + $0x10] sm:$0xff] %v228
        %239 = vst [vmem:[%s202 + $0x18] sm:$0xff] %v229
        %240 = vst [vmem:[%s202 + $0x20] sm:$0xff] %v230
        %241 = vst [vmem:[%s202 + $0x28] sm:$0xff] %v231
        %242 = vst [vmem:[%s202 + $0x30] sm:$0xff] %v232
        %243 = vst [vmem:[%s202 + $0x38] sm:$0xff] %v233
        %244 = vst [vmem:[%s202 + $0x40] sm:$0xff] %v234
        %245 = vst [vmem:[%s202 + $0x48] sm:$0xff] %v235
        %s246 = sand.u32 %s96, 1
        %s247 = scalar_lea.sflag [#allocation4], %s246
        %s248 = sand.u32 %s96, 1
        %s249 = smul.addr %s248, 80
        %s250 = scalar_lea.vmem [#allocation7], %s249
        // Predicated region
        $region37: #{tpu_custom_call.1} parent=27 // pred_check
          %p251 = pneg %p106
        $region38: #{tpu_custom_call.1} parent=27 // pred_check_branch
          %253 = sbr.rel (%p251) target = $region40
        $region39: #{tpu_custom_call.1} parent=27 // pred_region
          %s254 = smul.u32 10, %s24
          %s256 = ssub.s32 1280, 1280
          %257 = vsyncadd %s247, %s256
          %s258 = smul.addr %s25, 10
          %s259 = sadd.s32 %s254, %s258
          %s260 = smul.addr %s259, 128
          %s261 = scalar_lea.hbm %s2, %s260
          %s262 = sshll.u32 %s250, 4
          %s263 = int_to_ptr.vmem [resolvable:$true] %s262
          %268 = dma.vmem_to_hbm [thread:$0]  %s263, 1280, %s261, %s247, 128, 128, 8
        $region40: #{tpu_custom_call.1} parent=27 // pred_fallthru
          _
      $region28: #{tpu_custom_call.1} parent=5 // pred_fallthru
        _
      %p269 = scmp.le.s32.totalorder 2, %s15
      // Predicated region
      $region41: #{tpu_custom_call.1} parent=5 // pred_check
        %p270 = pneg %p269
      $region42: #{tpu_custom_call.1} parent=5 // pred_check_branch
        %272 = sbr.rel (%p270) target = $region44
      $region43: #{tpu_custom_call.1} parent=5 // pred_region
        %s273 = ssub.s32 %s15, 2
        // Predicated region
        $region45: #{tpu_custom_call.1} parent=43 // pred_check
          %p274 = pneg %p112
        $region46: #{tpu_custom_call.1} parent=43 // pred_check_branch
          %276 = sbr.rel (%p274) target = $region48
        $region47: #{tpu_custom_call.1} parent=43 // pred_region
          %s277 = sand.u32 %s97, 1
          %s278 = scalar_lea.sflag [#allocation4], %s277
          %s279 = sand.u32 %s97, 1
          %s280 = smul.addr %s279, 80
          %s281 = scalar_lea.vmem [#allocation7], %s280
          %282 = dma.done %s278, 1280
        $region48: #{tpu_custom_call.1} parent=43 // pred_fallthru
          _
      $region44: #{tpu_custom_call.1} parent=5 // pred_fallthru
        _
    $region6: #{tpu_custom_call.1} parent=1 // loop_footer
      %s19 = sadd.s32 1, %s15
    $region7: #{tpu_custom_call.1} parent=1 // loop_footer_branch
      %14 = sbr.rel target = $region3
    $region8: #{tpu_custom_call.1} parent=1 // loop_exit
      _
    %283 = vsyncpa [#allocation3], 1
    %s284 = scalar_lea.sflag [#allocation3], 1
    %285 = vsyncpa %s284, 1
    %286 = vsyncpa [#allocation6], 1
    %287 = vsyncpa [#allocation4], 1
    %s288 = scalar_lea.sflag [#allocation4], 1
    %289 = vsyncpa %s288, 1

</llo_original>
